<compile_context>
chip_gen: v6e
topology: v6e:2x2x1
jax: 0.10.0
libtpu: 0.0.40
codegen_flags: <defaults>
</compile_context>

<pallas_src>
import functools

import jax
import jax.numpy as jnp
from jax.experimental import pallas as pl
from jax.experimental.pallas import tpu as pltpu


# Plain Python constants only (jnp scalars at module scope get captured as constvars).
_SENTINEL_D2 = 3.0e38        # cross-graph / padded-column marker: large but finite
_PAD_THRESHOLD = 1.0e38      # decoded d2 >= this  =>  "not a real neighbour"
_KNOCKOUT = 0x7F7FFFFF       # int32 > any packed key built from d2 <= _SENTINEL_D2


def _round_up(x, m):
    return ((x + m - 1) // m) * m


def _vmem_budget():
    """Per-generation Mosaic VMEM limit and scratch budget for tile sizing."""
    try:
        cap = int(pltpu.get_tpu_info().vmem_capacity_bytes)
    except Exception:
        cap = 64 << 20                               # conservative default (v7x-sized)
    if cap >= (96 << 20):
        limit = 96 << 20                             # v5e/v6e: 128 MiB physical per TC
    else:
        limit = max(32 << 20, cap - (8 << 20))       # v7x: 64 MiB per TC -> ~56 MiB
    budget = max(8 << 20, limit - (16 << 20))        # headroom: blocks, outputs, scratch
    return limit, budget


def _knn_topk_kernel(k, m_pow2, pos_ref, pos_t_ref, batch_col_ref, batch_row_ref,
                     keys_ref):
    """One (query-row tile, column chunk) grid step.

    pos_ref:       (TQ, Dp) f32  query positions (row tile i)
    pos_t_ref:     (Dp, TN) f32  candidate positions, pre-transposed (column chunk j)
    batch_col_ref: (TQ, 1)  i32  batch id of each query row
    batch_row_ref: (1, TN)  i32  batch id of each candidate column
    keys_ref:      (TQ, K)  i32  running k smallest packed keys (accumulator over j)
    """
    j = pl.program_id(1)

    @pl.when(j == 0)
    def _():
        keys_ref[...] = jnp.full(keys_ref.shape, _KNOCKOUT, dtype=jnp.int32)

    p = pos_ref[...]                       # (TQ, Dp)
    pt = pos_t_ref[...]                    # (Dp, TN)
    b_col = batch_col_ref[...]             # (TQ, 1)
    b_row = batch_row_ref[...]             # (1, TN)
    tq, dp = p.shape
    tn = pt.shape[1]

    # Direct VPU squared distances (contraction dim dp = 2-3: MXU not worth it);
    # accumulator seeded from the first product. Exact 0 on the diagonal (self-loop).
    diff = p[:, 0:1] - pt[0:1, :]
    d2 = diff * diff
    for d in range(1, dp):
        diff = p[:, d:d + 1] - pt[d:d + 1, :]
        d2 = d2 + diff * diff

    # knn_graph is per-graph: mark cross-batch (and padded) pairs with a large finite
    # sentinel.  (Columns whose true d2 overflows to inf are treated as padding.)
    d2 = jnp.where(b_col == b_row, d2, _SENTINEL_D2)

    # Packed monotonic key: d2 >= 0, so its f32 bits order as int32; the low
    # log2(m_pow2) bits carry the GLOBAL column index -> one min per selection step
    # yields value and index together.
    col = j * tn + jax.lax.broadcasted_iota(jnp.int32, (tq, tn), 1)
    keys = (pltpu.bitcast(d2, jnp.int32) & (-m_pow2)) | col

    best = keys_ref[...]                   # (TQ, K) running best from previous chunks

    # Non-mutating top-k merge over (chunk keys) U (running best): keys are unique per
    # row, so "next minimum" == min over keys strictly greater than the previous one.
    # No (TQ, TN) writeback per step.
    prev = None
    for kk in range(k):                    # k is small & static -> unrolled
        if prev is None:
            cand, bcand = keys, best
        else:
            cand = jnp.where(keys > prev, keys, _KNOCKOUT)
            bcand = jnp.where(best > prev, best, _KNOCKOUT)
        cur = jnp.minimum(jnp.min(cand, axis=-1, keepdims=True),
                          jnp.min(bcand, axis=-1, keepdims=True))   # (TQ, 1)
        keys_ref[:, kk:kk + 1] = cur
        prev = cur


def _knn_pallas(pos_p, batch_p, k):
    """k nearest same-graph neighbours (self-loop included) for every node.

    Returns (nbr, dist): (N, k) int32 neighbour indices and (N, k) f32 exact
    Euclidean edge lengths.
    """
    n, dp = pos_p.shape
    vmem_limit, budget = _vmem_budget()

    # Lane-dense candidate (column) dimension: multiple of 128; padded columns batch -1.
    n_col = _round_up(max(n, 128), 128)

    # Query-row tile: as large as possible, but keep >= 2 row tiles so both v7x
    # TensorCores get work (harmless on 1-TC v5e/v6e).
    tq = min(256, _round_up(n, 8))
    while tq > 8 and _round_up(n, tq) // tq < 2:
        tq //= 2
    n_row = _round_up(n, tq)

    # Column chunk: bound the ~6 live (TQ, TN) f32/i32 temporaries by the budget so
    # TQ stays large independent of N; the chunk axis is pipelined ("arbitrary").
    tn_cap = max(128, (budget // (6 * 4 * tq)) // 128 * 128)
    tn = min(n_col, tn_cap)
    n_col = _round_up(n_col, tn)

    m_pow2 = max(128, pl.next_power_of_2(n_col))     # low-bit width for the column index

    pos_f = pos_p.astype(jnp.float32)
    batch_i = batch_p.astype(jnp.int32)
    pos_rows = jnp.zeros((n_row, dp), jnp.float32).at[:n].set(pos_f)
    pos_cols = jnp.zeros((dp, n_col), jnp.float32).at[:, :n].set(pos_f.T)
    batch_col = jnp.full((n_row, 1), -1, jnp.int32).at[:n, 0].set(batch_i)
    batch_row = jnp.full((1, n_col), -1, jnp.int32).at[0, :n].set(batch_i)

    kernel = functools.partial(_knn_topk_kernel, k, m_pow2)

    # TODO(synk): K (=6..12) lane width forces masked partial stores on the output;
    # padding K to a lane multiple is a minor residual win not taken here.
    keys = pl.pallas_call(
        kernel,
        grid=(n_row // tq, n_col // tn),
        in_specs=[
            pl.BlockSpec((tq, dp), lambda i, j: (i, 0)),     # query rows (row-tiled)
            pl.BlockSpec((dp, tn), lambda i, j: (0, j)),     # candidate column chunk
            pl.BlockSpec((tq, 1), lambda i, j: (i, 0)),
            pl.BlockSpec((1, tn), lambda i, j: (0, j)),
        ],
        out_specs=pl.BlockSpec((tq, k), lambda i, j: (i, 0)),  # resident across j
        out_shape=jax.ShapeDtypeStruct((n_row, k), jnp.int32),
        compiler_params=pltpu.CompilerParams(
            dimension_semantics=("parallel", "arbitrary"),
            vmem_limit_bytes=vmem_limit),
    )(pos_rows, pos_cols, batch_col, batch_row)

    # ---- XLA glue decode (N*k elements, cheap) ----
    keys = keys[:n]                                           # (N, k) packed keys
    idx = keys & (m_pow2 - 1)
    d2_trunc = jax.lax.bitcast_convert_type(keys & (-m_pow2), jnp.float32)
    is_pad = d2_trunc >= _PAD_THRESHOLD                       # ragged graph: < k same-batch nodes
    rows = jnp.arange(n, dtype=jnp.int32)[:, None]
    nbr = jnp.where(is_pad, rows, idx)                        # pad slots -> 0-length self-loop
    # Exact edge lengths recomputed here (fixes the packed-key truncation bias and keeps
    # sqrt / decode out of the kernel's unrolled selection loop).
    dvec = pos_f[nbr] - pos_f[:, None, :]                     # (N, k, Dp)
    dist = jnp.sqrt(jnp.sum(dvec * dvec, axis=-1))
    dist = jnp.where(is_pad, 0.0, dist)
    return nbr, dist


def knn_edges(x, pos, edge_index, edge_attr, batch, perm, score, i,
              *, start_k=6, k_increment=0, no_op=False):
    """JAX/Pallas equivalent of KnnEdges.forward."""
    if no_op:
        return (x, pos, edge_index, edge_attr, batch, perm, score)

    k = int(start_k + k_increment * i)            # static (k determines output shapes)
    pos_p = pos[perm]                             # row gather (glue)
    n = pos_p.shape[0]

    nbr, dist = _knn_pallas(pos_p, batch, k)      # (N, k) neighbour ids / exact lengths

    # edge_index = [source (neighbor), target (query)]  -- flow='source_to_target'
    tgt = jnp.repeat(jnp.arange(n, dtype=jnp.int32), k)
    new_edge_index = jnp.stack([nbr.reshape(-1), tgt], axis=0)        # (2, N*k) i32

    new_edge_attr = edge_attr
    if edge_attr is not None:
        # Distance(cat=False, norm=True): divide by the max edge length (global max on
        # N*k elements lives in glue so the kernel stays query/column tiled).
        max_d = jnp.max(dist)
        new_edge_attr = (dist / jnp.maximum(max_d, 1e-12)).reshape(-1, 1)   # (N*k, 1)

    # TODO(synk): PyG's knn_graph returns fewer edges for graphs with < k nodes; here
    # those slots are filled with duplicate 0-length self-loops to keep shapes static.
    return (x, pos_p, new_edge_index, new_edge_attr, batch, perm, score)


if __name__ == "__main__":
    key = jax.random.PRNGKey(0)
    k1, k2, k3, k4 = jax.random.split(key, 4)

    # Small synthetic problem: 2 graphs, 32 original nodes, pooling keeps 16 (8 per graph).
    n_total, n_keep, hidden, pos_dim = 32, 16, 32, 2
    start_k, k_increment, layer_i = 6, 0, 0

    x = jax.random.normal(k1, (n_keep, hidden), dtype=jnp.float32)        # pooled features (pass-through)
    pos = jax.random.normal(k2, (n_total, pos_dim), dtype=jnp.float32)    # original positions
    perm = jnp.concatenate([jnp.arange(0, 8), jnp.arange(16, 24)]).astype(jnp.int32)  # kept nodes
    batch = jnp.concatenate([jnp.zeros(8, jnp.int32), jnp.ones(8, jnp.int32)])        # batch of kept nodes
    score = jax.random.uniform(k3, (n_keep,), dtype=jnp.float32)
    old_edge_index = jnp.zeros((2, 10), dtype=jnp.int32)
    old_edge_attr = jax.random.normal(k4, (10, 1), dtype=jnp.float32)

    out = knn_edges(x, pos, old_edge_index, old_edge_attr, batch, perm, score, layer_i,
                    start_k=start_k, k_increment=k_increment, no_op=False)
    out = jax.block_until_ready(out)
    x_o, pos_o, ei_o, ea_o, batch_o, perm_o, score_o = out

    assert pos_o.shape == (n_keep, pos_dim)
    assert ei_o.shape == (2, n_keep * start_k)
    assert ea_o.shape == (n_keep * start_k, 1)
    assert bool(jnp.all(jnp.isfinite(ea_o)))
    assert float(jnp.max(ea_o)) <= 1.0 + 1e-5
    # every neighbor index is a valid kept node
    assert bool(jnp.all((ei_o[0] >= 0) & (ei_o[0] < n_keep)))
    # every edge connects nodes of the same graph
    assert bool(jnp.all(batch_o[ei_o[0]] == batch_o[ei_o[1]]))

    print("KERNEL_OK")
</pallas_src>

<mosaic_0001>
module attributes {stable_mosaic.version = 11 : i64} {
  func.func @_knn_topk_kernel(%arg0: i32, %arg1: i32, %arg2: memref<8x2xf32, #tpu.memory_space<vmem>>, %arg3: memref<2x128xf32, #tpu.memory_space<vmem>>, %arg4: memref<8x1xi32, #tpu.memory_space<vmem>>, %arg5: memref<1x128xi32, #tpu.memory_space<vmem>>, %arg6: memref<8x6xi32, #tpu.memory_space<vmem>>) attributes {dimension_semantics = [#tpu.dimension_semantics<parallel>, #tpu.dimension_semantics<arbitrary>], iteration_bounds = array<i64: 2, 1>, scalar_prefetch = 0 : i64, scratch_operands = 0 : i64, tpu.core_type = #tpu.core_type<tc>, window_params = [{transform_indices = @transform_0, window_bounds = array<i64: 8, 2>}, {transform_indices = @transform_1, window_bounds = array<i64: 2, 128>}, {transform_indices = @transform_2, window_bounds = array<i64: 8, 1>}, {transform_indices = @transform_3, window_bounds = array<i64: 1, 128>}, {transform_indices = @transform_4, window_bounds = array<i64: 8, 6>}]} {
    %c0_i32 = arith.constant 0 : i32
    %0 = arith.cmpi eq, %arg1, %c0_i32 : i32
    %1 = arith.extui %0 : i1 to i32
    %c0_i32_0 = arith.constant 0 : i32
    %2 = arith.cmpi ne, %1, %c0_i32_0 : i32
    scf.if %2 {
      %c2139095039_i32_38 = arith.constant 2139095039 : i32
      %110 = vector.broadcast %c2139095039_i32_38 : i32 to vector<8x6xi32>
      %c0_39 = arith.constant 0 : index
      %c0_40 = arith.constant 0 : index
      %111 = vector.load %arg6[%c0_39, %c0_40] : memref<8x6xi32, #tpu.memory_space<vmem>>, vector<8x6xi32>
      tpu.vector_store %arg6[%c0_39, %c0_40], %110 {strides = array<i32>} : memref<8x6xi32, #tpu.memory_space<vmem>>, vector<8x6xi32>,
    } else {
    }
    %c0 = arith.constant 0 : index
    %c0_1 = arith.constant 0 : index
    %3 = vector.load %arg2[%c0, %c0_1] : memref<8x2xf32, #tpu.memory_space<vmem>>, vector<8x2xf32>
    %c0_2 = arith.constant 0 : index
    %c0_3 = arith.constant 0 : index
    %4 = vector.load %arg3[%c0_2, %c0_3] : memref<2x128xf32, #tpu.memory_space<vmem>>, vector<2x128xf32>
    %c0_4 = arith.constant 0 : index
    %c0_5 = arith.constant 0 : index
    %5 = vector.load %arg4[%c0_4, %c0_5] : memref<8x1xi32, #tpu.memory_space<vmem>>, vector<8x1xi32>
    %c0_6 = arith.constant 0 : index
    %c0_7 = arith.constant 0 : index
    %6 = vector.load %arg5[%c0_6, %c0_7] : memref<1x128xi32, #tpu.memory_space<vmem>>, vector<1x128xi32>
    %7 = vector.extract_strided_slice %3 {offsets = [0, 0], sizes = [8, 1], strides = [1, 1]} : vector<8x2xf32> to vector<8x1xf32>
    %8 = vector.extract_strided_slice %4 {offsets = [0, 0], sizes = [1, 128], strides = [1, 1]} : vector<2x128xf32> to vector<1x128xf32>
    %9 = vector.broadcast %7 : vector<8x1xf32> to vector<8x128xf32>
    %10 = vector.broadcast %8 : vector<1x128xf32> to vector<8x128xf32>
    %11 = arith.subf %9, %10 : vector<8x128xf32>
    %12 = arith.mulf %11, %11 : vector<8x128xf32>
    %13 = vector.extract_strided_slice %3 {offsets = [0, 1], sizes = [8, 1], strides = [1, 1]} : vector<8x2xf32> to vector<8x1xf32>
    %14 = vector.extract_strided_slice %4 {offsets = [1, 0], sizes = [1, 128], strides = [1, 1]} : vector<2x128xf32> to vector<1x128xf32>
    %15 = vector.broadcast %13 : vector<8x1xf32> to vector<8x128xf32>
    %16 = vector.broadcast %14 : vector<1x128xf32> to vector<8x128xf32>
    %17 = arith.subf %15, %16 : vector<8x128xf32>
    %18 = arith.mulf %17, %17 : vector<8x128xf32>
    %19 = arith.addf %12, %18 : vector<8x128xf32>
    %20 = vector.broadcast %5 : vector<8x1xi32> to vector<8x128xi32>
    %21 = vector.broadcast %6 : vector<1x128xi32> to vector<8x128xi32>
    %22 = arith.cmpi eq, %20, %21 : vector<8x128xi32>
    %cst = arith.constant 3.000000e+38 : f32
    %23 = vector.broadcast %cst : f32 to vector<8x128xf32>
    %24 = arith.select %22, %19, %23 : vector<8x128xi1>, vector<8x128xf32>
    %c128_i32 = arith.constant 128 : i32
    %25 = arith.muli %arg1, %c128_i32 : i32
    %26 = tpu.iota {dimensions = array<i32: 1>} : vector<8x128xi32>
    %27 = vector.broadcast %25 : i32 to vector<8x128xi32>
    %28 = arith.addi %27, %26 : vector<8x128xi32>
    %29 = tpu.bitcast %24 : vector<8x128xf32> -> vector<8x128xi32>
    %c-128_i32 = arith.constant -128 : i32
    %30 = vector.broadcast %c-128_i32 : i32 to vector<8x128xi32>
    %31 = arith.andi %29, %30 : vector<8x128xi32>
    %32 = arith.ori %31, %28 : vector<8x128xi32>
    %c0_8 = arith.constant 0 : index
    %c0_9 = arith.constant 0 : index
    %33 = vector.load %arg6[%c0_8, %c0_9] : memref<8x6xi32, #tpu.memory_space<vmem>>, vector<8x6xi32>
    %cst_10 = arith.constant dense<2147483647> : vector<8xi32>
    %34 = vector.multi_reduction <minsi>, %32, %cst_10 [1] : vector<8x128xi32> to vector<8xi32>
    %35 = vector.shape_cast %34 : vector<8xi32> to vector<8x1xi32>
    %cst_11 = arith.constant dense<2147483647> : vector<8xi32>
    %36 = vector.multi_reduction <minsi>, %33, %cst_11 [1] : vector<8x6xi32> to vector<8xi32>
    %37 = vector.shape_cast %36 : vector<8xi32> to vector<8x1xi32>
    %38 = arith.minsi %35, %37 : vector<8x1xi32>
    %c0_12 = arith.constant 0 : index
    %c0_13 = arith.constant 0 : index
    %39 = vector.load %arg6[%c0_12, %c0_13] : memref<8x6xi32, #tpu.memory_space<vmem>>, vector<8x1xi32>
    tpu.vector_store %arg6[%c0_12, %c0_13], %38 {strides = array<i32>} : memref<8x6xi32, #tpu.memory_space<vmem>>, vector<8x1xi32>,
    %40 = vector.broadcast %38 : vector<8x1xi32> to vector<8x128xi32>
    %41 = arith.cmpi sgt, %32, %40 : vector<8x128xi32>
    %c2139095039_i32 = arith.constant 2139095039 : i32
    %42 = vector.broadcast %c2139095039_i32 : i32 to vector<8x128xi32>
    %43 = arith.select %41, %32, %42 : vector<8x128xi1>, vector<8x128xi32>
    %44 = vector.broadcast %38 : vector<8x1xi32> to vector<8x6xi32>
    %45 = arith.cmpi sgt, %33, %44 : vector<8x6xi32>
    %c2139095039_i32_14 = arith.constant 2139095039 : i32
    %46 = vector.broadcast %c2139095039_i32_14 : i32 to vector<8x6xi32>
    %47 = arith.select %45, %33, %46 : vector<8x6xi1>, vector<8x6xi32>
    %cst_15 = arith.constant dense<2147483647> : vector<8xi32>
    %48 = vector.multi_reduction <minsi>, %43, %cst_15 [1] : vector<8x128xi32> to vector<8xi32>
    %49 = vector.shape_cast %48 : vector<8xi32> to vector<8x1xi32>
    %cst_16 = arith.constant dense<2147483647> : vector<8xi32>
    %50 = vector.multi_reduction <minsi>, %47, %cst_16 [1] : vector<8x6xi32> to vector<8xi32>
    %51 = vector.shape_cast %50 : vector<8xi32> to vector<8x1xi32>
    %52 = arith.minsi %49, %51 : vector<8x1xi32>
    %c0_17 = arith.constant 0 : index
    %c1 = arith.constant 1 : index
    %53 = vector.load %arg6[%c0_17, %c1] : memref<8x6xi32, #tpu.memory_space<vmem>>, vector<8x1xi32>
    tpu.vector_store %arg6[%c0_17, %c1], %52 {strides = array<i32>} : memref<8x6xi32, #tpu.memory_space<vmem>>, vector<8x1xi32>,
    %54 = vector.broadcast %52 : vector<8x1xi32> to vector<8x128xi32>
    %55 = arith.cmpi sgt, %32, %54 : vector<8x128xi32>
    %c2139095039_i32_18 = arith.constant 2139095039 : i32
    %56 = vector.broadcast %c2139095039_i32_18 : i32 to vector<8x128xi32>
    %57 = arith.select %55, %32, %56 : vector<8x128xi1>, vector<8x128xi32>
    %58 = vector.broadcast %52 : vector<8x1xi32> to vector<8x6xi32>
    %59 = arith.cmpi sgt, %33, %58 : vector<8x6xi32>
    %c2139095039_i32_19 = arith.constant 2139095039 : i32
    %60 = vector.broadcast %c2139095039_i32_19 : i32 to vector<8x6xi32>
    %61 = arith.select %59, %33, %60 : vector<8x6xi1>, vector<8x6xi32>
    %cst_20 = arith.constant dense<2147483647> : vector<8xi32>
    %62 = vector.multi_reduction <minsi>, %57, %cst_20 [1] : vector<8x128xi32> to vector<8xi32>
    %63 = vector.shape_cast %62 : vector<8xi32> to vector<8x1xi32>
    %cst_21 = arith.constant dense<2147483647> : vector<8xi32>
    %64 = vector.multi_reduction <minsi>, %61, %cst_21 [1] : vector<8x6xi32> to vector<8xi32>
    %65 = vector.shape_cast %64 : vector<8xi32> to vector<8x1xi32>
    %66 = arith.minsi %63, %65 : vector<8x1xi32>
    %c0_22 = arith.constant 0 : index
    %c2 = arith.constant 2 : index
    %67 = vector.load %arg6[%c0_22, %c2] : memref<8x6xi32, #tpu.memory_space<vmem>>, vector<8x1xi32>
    tpu.vector_store %arg6[%c0_22, %c2], %66 {strides = array<i32>} : memref<8x6xi32, #tpu.memory_space<vmem>>, vector<8x1xi32>,
    %68 = vector.broadcast %66 : vector<8x1xi32> to vector<8x128xi32>
    %69 = arith.cmpi sgt, %32, %68 : vector<8x128xi32>
    %c2139095039_i32_23 = arith.constant 2139095039 : i32
    %70 = vector.broadcast %c2139095039_i32_23 : i32 to vector<8x128xi32>
    %71 = arith.select %69, %32, %70 : vector<8x128xi1>, vector<8x128xi32>
    %72 = vector.broadcast %66 : vector<8x1xi32> to vector<8x6xi32>
    %73 = arith.cmpi sgt, %33, %72 : vector<8x6xi32>
    %c2139095039_i32_24 = arith.constant 2139095039 : i32
    %74 = vector.broadcast %c2139095039_i32_24 : i32 to vector<8x6xi32>
    %75 = arith.select %73, %33, %74 : vector<8x6xi1>, vector<8x6xi32>
    %cst_25 = arith.constant dense<2147483647> : vector<8xi32>
    %76 = vector.multi_reduction <minsi>, %71, %cst_25 [1] : vector<8x128xi32> to vector<8xi32>
    %77 = vector.shape_cast %76 : vector<8xi32> to vector<8x1xi32>
    %cst_26 = arith.constant dense<2147483647> : vector<8xi32>
    %78 = vector.multi_reduction <minsi>, %75, %cst_26 [1] : vector<8x6xi32> to vector<8xi32>
    %79 = vector.shape_cast %78 : vector<8xi32> to vector<8x1xi32>
    %80 = arith.minsi %77, %79 : vector<8x1xi32>
    %c0_27 = arith.constant 0 : index
    %c3 = arith.constant 3 : index
    %81 = vector.load %arg6[%c0_27, %c3] : memref<8x6xi32, #tpu.memory_space<vmem>>, vector<8x1xi32>
    tpu.vector_store %arg6[%c0_27, %c3], %80 {strides = array<i32>} : memref<8x6xi32, #tpu.memory_space<vmem>>, vector<8x1xi32>,
    %82 = vector.broadcast %80 : vector<8x1xi32> to vector<8x128xi32>
    %83 = arith.cmpi sgt, %32, %82 : vector<8x128xi32>
    %c2139095039_i32_28 = arith.constant 2139095039 : i32
    %84 = vector.broadcast %c2139095039_i32_28 : i32 to vector<8x128xi32>
    %85 = arith.select %83, %32, %84 : vector<8x128xi1>, vector<8x128xi32>
    %86 = vector.broadcast %80 : vector<8x1xi32> to vector<8x6xi32>
    %87 = arith.cmpi sgt, %33, %86 : vector<8x6xi32>
    %c2139095039_i32_29 = arith.constant 2139095039 : i32
    %88 = vector.broadcast %c2139095039_i32_29 : i32 to vector<8x6xi32>
    %89 = arith.select %87, %33, %88 : vector<8x6xi1>, vector<8x6xi32>
    %cst_30 = arith.constant dense<2147483647> : vector<8xi32>
    %90 = vector.multi_reduction <minsi>, %85, %cst_30 [1] : vector<8x128xi32> to vector<8xi32>
    %91 = vector.shape_cast %90 : vector<8xi32> to vector<8x1xi32>
    %cst_31 = arith.constant dense<2147483647> : vector<8xi32>
    %92 = vector.multi_reduction <minsi>, %89, %cst_31 [1] : vector<8x6xi32> to vector<8xi32>
    %93 = vector.shape_cast %92 : vector<8xi32> to vector<8x1xi32>
    %94 = arith.minsi %91, %93 : vector<8x1xi32>
    %c0_32 = arith.constant 0 : index
    %c4 = arith.constant 4 : index
    %95 = vector.load %arg6[%c0_32, %c4] : memref<8x6xi32, #tpu.memory_space<vmem>>, vector<8x1xi32>
    tpu.vector_store %arg6[%c0_32, %c4], %94 {strides = array<i32>} : memref<8x6xi32, #tpu.memory_space<vmem>>, vector<8x1xi32>,
    %96 = vector.broadcast %94 : vector<8x1xi32> to vector<8x128xi32>
    %97 = arith.cmpi sgt, %32, %96 : vector<8x128xi32>
    %c2139095039_i32_33 = arith.constant 2139095039 : i32
    %98 = vector.broadcast %c2139095039_i32_33 : i32 to vector<8x128xi32>
    %99 = arith.select %97, %32, %98 : vector<8x128xi1>, vector<8x128xi32>
    %100 = vector.broadcast %94 : vector<8x1xi32> to vector<8x6xi32>
    %101 = arith.cmpi sgt, %33, %100 : vector<8x6xi32>
    %c2139095039_i32_34 = arith.constant 2139095039 : i32
    %102 = vector.broadcast %c2139095039_i32_34 : i32 to vector<8x6xi32>
    %103 = arith.select %101, %33, %102 : vector<8x6xi1>, vector<8x6xi32>
    %cst_35 = arith.constant dense<2147483647> : vector<8xi32>
    %104 = vector.multi_reduction <minsi>, %99, %cst_35 [1] : vector<8x128xi32> to vector<8xi32>
    %105 = vector.shape_cast %104 : vector<8xi32> to vector<8x1xi32>
    %cst_36 = arith.constant dense<2147483647> : vector<8xi32>
    %106 = vector.multi_reduction <minsi>, %103, %cst_36 [1] : vector<8x6xi32> to vector<8xi32>
    %107 = vector.shape_cast %106 : vector<8xi32> to vector<8x1xi32>
    %108 = arith.minsi %105, %107 : vector<8x1xi32>
    %c0_37 = arith.constant 0 : index
    %c5 = arith.constant 5 : index
    %109 = vector.load %arg6[%c0_37, %c5] : memref<8x6xi32, #tpu.memory_space<vmem>>, vector<8x1xi32>
    tpu.vector_store %arg6[%c0_37, %c5], %108 {strides = array<i32>} : memref<8x6xi32, #tpu.memory_space<vmem>>, vector<8x1xi32>,
    return
  }
  func.func @transform_0(%arg0: i32, %arg1: i32) -> (i32, i32) {
    %c0_i32 = arith.constant 0 : i32
    %c0_i32_0 = arith.constant 0 : i32
    return %arg0, %c0_i32 : i32, i32
  }
  func.func @transform_1(%arg0: i32, %arg1: i32) -> (i32, i32) {
    %c0_i32 = arith.constant 0 : i32
    %c0_i32_0 = arith.constant 0 : i32
    return %c0_i32, %arg1 : i32, i32
  }
  func.func @transform_2(%arg0: i32, %arg1: i32) -> (i32, i32) {
    %c0_i32 = arith.constant 0 : i32
    %c0_i32_0 = arith.constant 0 : i32
    return %arg0, %c0_i32 : i32, i32
  }
  func.func @transform_3(%arg0: i32, %arg1: i32) -> (i32, i32) {
    %c0_i32 = arith.constant 0 : i32
    %c0_i32_0 = arith.constant 0 : i32
    return %c0_i32, %arg1 : i32, i32
  }
  func.func @transform_4(%arg0: i32, %arg1: i32) -> (i32, i32) {
    %c0_i32 = arith.constant 0 : i32
    %c0_i32_0 = arith.constant 0 : i32
    return %arg0, %c0_i32 : i32, i32
  }
}

</mosaic_0001>

<llo_original>
// kernel: tpu_custom_call.1
$region0: #{tpu_custom_call.1}
  #allocation0 [shape = 'u32[]', space=smem, size = 0x4, offset = 0x4, fixed_abs, tag = 'smem constant byte address 0x4 - core index']
  #allocation1 [shape = 'u32[144,128]{1,0:T(1,128)}', space=vmem, size = 0x12000, scoped, tag = 'internal scratch']
  %s0 = inlined_call_operand.vmem [shape: f32[16,2], index: 0, kind: input, shape index: {}]
  %s1 = inlined_call_operand.vmem [shape: f32[2,128], index: 1, kind: input, shape index: {}]
  %s2 = inlined_call_operand.vmem [shape: s32[16,1], index: 2, kind: input, shape index: {}]
  %s3 = inlined_call_operand.vmem [shape: s32[1,128], index: 3, kind: input, shape index: {}]
  %s4 = inlined_call_operand.vmem [shape: s32[16,6], index: 4, kind: output, shape index: {}]
  %s5 = sld [smem:[#allocation0]]
  $region53: #{tpu_custom_call.1} parent=0
    _
  %s7 = ssub.s32 1, %s5
  %s8 = scalar_select 0, %s7, %s5
  loop: start=0, step=1, limit=4
  $region2: #{tpu_custom_call.1} parent=0 // loop_pre_header
    _
  $region3: #{tpu_custom_call.1} parent=0 // loop_header
    %s10 = sphi 0, %s14
    %p11 = scmp.ge.s32.totalorder %s10, 4
    %s17 = sphi 0, %s29
    %s18 = sphi 0, %s25
    %s19 = sphi 0, %s17
    %s20 = sphi 0, %s18
    %s21 = sphi 0, %s19
    %s22 = sphi 0, %s20
    %s32 = sphi 0, %s34
    %s35 = sphi 0, %s32
    %s36 = sphi 0, %s35
    %s52 = sphi 0, %s36
    %s58 = sphi 0, %s60
    %s61 = sphi 0, %s58
    %s62 = sphi 0, %s61
    %s78 = sphi 0, %s62
    %s84 = sphi 0, %s86
    %s87 = sphi 0, %s84
    %s88 = sphi 0, %s87
    %s104 = sphi 0, %s88
    %s110 = sphi 0, %s112
    %s113 = sphi 0, %s110
    %s114 = sphi 0, %s113
    %s130 = sphi 0, %s114
    %s136 = sphi 0, %s138
    %s139 = sphi 0, %s136
    %s140 = sphi 0, %s139
    %s156 = sphi 0, %s140
  $region4: #{tpu_custom_call.1} parent=0 // loop_header_branch
    %13 = sbr.rel (%p11) target = $region8
  $region5: #{tpu_custom_call.1} parent=0 // loop_body
    %s15 = ssub.s32 %s10, 1
    %s16 = ssub.s32 %s10, 2
    %s23 = sadd.s32 1, %s18
    %p24 = scmp.ge.s32.totalorder %s23, 1
    %s25 = scalar_select %p24, 0, %s23
    %s26 = sadd.s32 1, %s17
    %s27 = scalar_select %p24, %s26, %s17
    %p28 = scmp.ge.s32.totalorder %s27, 2
    %s29 = scalar_select %p28, 0, %s27
    %s30 = ssub.s32 %s17, %s29
    %p31 = scmp.eq.s32.totalorder %s30, 0
    %s33 = sadd.s32 %s32, 1
    %s34 = scalar_select %p31, %s32, %s33
    %p37 = pneg %p31
    %p38 = scmp.eq.s32.totalorder %s10, 1
    %p39 = por %p37, %p38
    %p40 = scmp.ne.s32.totalorder %s32, %s35
    %p41 = scmp.eq.s32.totalorder %s10, 0
    %p42 = por %p40, %p41
    %p43 = scmp.ne.s32.totalorder %s32, %s35
    %p44 = scmp.eq.s32.totalorder %s15, 1
    %p45 = por %p43, %p44
    %p46 = scmp.ne.s32.totalorder %s35, %s36
    %p47 = scmp.eq.s32.totalorder %s15, 0
    %p48 = por %p46, %p47
    %p49 = scmp.ne.s32.totalorder %s35, %s36
    %p50 = scmp.eq.s32.totalorder %s16, 1
    %p51 = por %p49, %p50
    %p53 = scmp.ne.s32.totalorder %s36, %s52
    %p54 = scmp.eq.s32.totalorder %s16, 0
    %p55 = por %p53, %p54
    %s56 = ssub.s32 %s18, %s25
    %p57 = scmp.eq.s32.totalorder %s56, 0
    %s59 = sadd.s32 %s58, 1
    %s60 = scalar_select %p57, %s58, %s59
    %p63 = pneg %p57
    %p64 = scmp.eq.s32.totalorder %s10, 1
    %p65 = por %p63, %p64
    %p66 = scmp.ne.s32.totalorder %s58, %s61
    %p67 = scmp.eq.s32.totalorder %s10, 0
    %p68 = por %p66, %p67
    %p69 = scmp.ne.s32.totalorder %s58, %s61
    %p70 = scmp.eq.s32.totalorder %s15, 1
    %p71 = por %p69, %p70
    %p72 = scmp.ne.s32.totalorder %s61, %s62
    %p73 = scmp.eq.s32.totalorder %s15, 0
    %p74 = por %p72, %p73
    %p75 = scmp.ne.s32.totalorder %s61, %s62
    %p76 = scmp.eq.s32.totalorder %s16, 1
    %p77 = por %p75, %p76
    %p79 = scmp.ne.s32.totalorder %s62, %s78
    %p80 = scmp.eq.s32.totalorder %s16, 0
    %p81 = por %p79, %p80
    %s82 = ssub.s32 %s17, %s29
    %p83 = scmp.eq.s32.totalorder %s82, 0
    %s85 = sadd.s32 %s84, 1
    %s86 = scalar_select %p83, %s84, %s85
    %p89 = pneg %p83
    %p90 = scmp.eq.s32.totalorder %s10, 1
    %p91 = por %p89, %p90
    %p92 = scmp.ne.s32.totalorder %s84, %s87
    %p93 = scmp.eq.s32.totalorder %s10, 0
    %p94 = por %p92, %p93
    %p95 = scmp.ne.s32.totalorder %s84, %s87
    %p96 = scmp.eq.s32.totalorder %s15, 1
    %p97 = por %p95, %p96
    %p98 = scmp.ne.s32.totalorder %s87, %s88
    %p99 = scmp.eq.s32.totalorder %s15, 0
    %p100 = por %p98, %p99
    %p101 = scmp.ne.s32.totalorder %s87, %s88
    %p102 = scmp.eq.s32.totalorder %s16, 1
    %p103 = por %p101, %p102
    %p105 = scmp.ne.s32.totalorder %s88, %s104
    %p106 = scmp.eq.s32.totalorder %s16, 0
    %p107 = por %p105, %p106
    %s108 = ssub.s32 %s18, %s25
    %p109 = scmp.eq.s32.totalorder %s108, 0
    %s111 = sadd.s32 %s110, 1
    %s112 = scalar_select %p109, %s110, %s111
    %p115 = pneg %p109
    %p116 = scmp.eq.s32.totalorder %s10, 1
    %p117 = por %p115, %p116
    %p118 = scmp.ne.s32.totalorder %s110, %s113
    %p119 = scmp.eq.s32.totalorder %s10, 0
    %p120 = por %p118, %p119
    %p121 = scmp.ne.s32.totalorder %s110, %s113
    %p122 = scmp.eq.s32.totalorder %s15, 1
    %p123 = por %p121, %p122
    %p124 = scmp.ne.s32.totalorder %s113, %s114
    %p125 = scmp.eq.s32.totalorder %s15, 0
    %p126 = por %p124, %p125
    %p127 = scmp.ne.s32.totalorder %s113, %s114
    %p128 = scmp.eq.s32.totalorder %s16, 1
    %p129 = por %p127, %p128
    %p131 = scmp.ne.s32.totalorder %s114, %s130
    %p132 = scmp.eq.s32.totalorder %s16, 0
    %p133 = por %p131, %p132
    %s134 = ssub.s32 %s17, %s29
    %p135 = scmp.eq.s32.totalorder %s134, 0
    %s137 = sadd.s32 %s136, 1
    %s138 = scalar_select %p135, %s136, %s137
    %p141 = pneg %p135
    %p142 = scmp.eq.s32.totalorder %s10, 1
    %p143 = por %p141, %p142
    %p144 = scmp.ne.s32.totalorder %s136, %s139
    %p145 = scmp.eq.s32.totalorder %s10, 0
    %p146 = por %p144, %p145
    %p147 = scmp.ne.s32.totalorder %s136, %s139
    %p148 = scmp.eq.s32.totalorder %s15, 1
    %p149 = por %p147, %p148
    %p150 = scmp.ne.s32.totalorder %s139, %s140
    %p151 = scmp.eq.s32.totalorder %s15, 0
    %p152 = por %p150, %p151
    %p153 = scmp.ne.s32.totalorder %s139, %s140
    %p154 = scmp.eq.s32.totalorder %s16, 1
    %p155 = por %p153, %p154
    %p157 = scmp.ne.s32.totalorder %s140, %s156
    %p158 = scmp.eq.s32.totalorder %s16, 0
    %p159 = por %p157, %p158
    %p160 = scmp.le.s32.totalorder 1, %s10
    %p161 = scmp.lt.s32.totalorder %s10, 3
    %p162 = pnand %p160, %p161
    %p163 = pneg %p162
    // Predicated region
    $region9: #{tpu_custom_call.1} parent=5 // pred_check
      _
    $region10: #{tpu_custom_call.1} parent=5 // pred_check_branch
      %165 = sbr.rel (%p162) target = $region12
    $region11: #{tpu_custom_call.1} parent=5 // pred_region
      %s166 = ssub.s32 %s10, 1
      // Predicated region
      $region13: #{tpu_custom_call.1} parent=11 // pred_check
        %p167 = pneg %p74
      $region14: #{tpu_custom_call.1} parent=11 // pred_check_branch
        %169 = sbr.rel (%p167) target = $region16
      $region15: #{tpu_custom_call.1} parent=11 // pred_region
        %p170 = scmp.lt.s32.totalorder %s20, 0
        %s171 = scalar_select %p170, %s20, 0
        %s172 = smul.addr %s171, 2
        %s173 = scalar_lea.vmem %s1, %s172
      $region16: #{tpu_custom_call.1} parent=11 // pred_fallthru
        _
      // Predicated region
      $region17: #{tpu_custom_call.1} parent=11 // pred_check
        %p174 = pneg %p126
      $region18: #{tpu_custom_call.1} parent=11 // pred_check_branch
        %176 = sbr.rel (%p174) target = $region20
      $region19: #{tpu_custom_call.1} parent=11 // pred_region
        %p177 = scmp.lt.s32.totalorder %s20, 0
        %s178 = scalar_select %p177, %s20, 0
        %s179 = scalar_lea.vmem %s3, %s178
      $region20: #{tpu_custom_call.1} parent=11 // pred_fallthru
        _
    $region12: #{tpu_custom_call.1} parent=5 // pred_fallthru
      _
    %p180 = scmp.lt.s32.totalorder %s10, 2
    // Predicated region
    $region21: #{tpu_custom_call.1} parent=5 // pred_check
      %p181 = pneg %p180
    $region22: #{tpu_custom_call.1} parent=5 // pred_check_branch
      %183 = sbr.rel (%p181) target = $region24
    $region23: #{tpu_custom_call.1} parent=5 // pred_region
      // Predicated region
      $region25: #{tpu_custom_call.1} parent=23 // pred_check
        %p184 = pneg %p42
      $region26: #{tpu_custom_call.1} parent=23 // pred_check_branch
        %186 = sbr.rel (%p184) target = $region28
      $region27: #{tpu_custom_call.1} parent=23 // pred_region
        %p187 = scmp.lt.s32.totalorder %s17, 1
        %s188 = scalar_select %p187, %s17, 1
        %s189 = smul.addr %s188, 8
        %s190 = scalar_lea.vmem %s0, %s189
      $region28: #{tpu_custom_call.1} parent=23 // pred_fallthru
        _
      // Predicated region
      $region29: #{tpu_custom_call.1} parent=23 // pred_check
        %p191 = pneg %p94
      $region30: #{tpu_custom_call.1} parent=23 // pred_check_branch
        %193 = sbr.rel (%p191) target = $region32
      $region31: #{tpu_custom_call.1} parent=23 // pred_region
        %p194 = scmp.lt.s32.totalorder %s17, 1
        %s195 = scalar_select %p194, %s17, 1
        %s196 = smul.addr %s195, 8
        %s197 = scalar_lea.vmem %s2, %s196
      $region32: #{tpu_custom_call.1} parent=23 // pred_fallthru
        _
    $region24: #{tpu_custom_call.1} parent=5 // pred_fallthru
      _
    %p198 = scmp.le.s32.totalorder 1, %s10
    %p199 = scmp.lt.s32.totalorder %s10, 3
    %p200 = pnand %p198, %p199
    %p201 = pneg %p200
    // Predicated region
    $region33: #{tpu_custom_call.1} parent=5 // pred_check
      _
    $region34: #{tpu_custom_call.1} parent=5 // pred_check_branch
      %203 = sbr.rel (%p200) target = $region36
    $region35: #{tpu_custom_call.1} parent=5 // pred_region
      %s204 = ssub.s32 %s10, 1
      %p205 = scmp.lt.s32.totalorder %s19, 1
      %s206 = scalar_select %p205, %s19, 1
      %s207 = smul.addr %s206, 8
      %s208 = scalar_lea.vmem %s0, %s207
      %p209 = pneg %p48
      %p210 = pneg %p45
      %p211 = scmp.lt.s32.totalorder %s20, 0
      %s212 = scalar_select %p211, %s20, 0
      %s213 = smul.addr %s212, 2
      %s214 = scalar_lea.vmem %s1, %s213
      %p215 = pneg %p74
      %p216 = pneg %p71
      %p217 = scmp.lt.s32.totalorder %s19, 1
      %s218 = scalar_select %p217, %s19, 1
      %s219 = smul.addr %s218, 8
      %s220 = scalar_lea.vmem %s2, %s219
      %p221 = pneg %p100
      %p222 = pneg %p97
      %p223 = scmp.lt.s32.totalorder %s20, 0
      %s224 = scalar_select %p223, %s20, 0
      %s225 = scalar_lea.vmem %s3, %s224
      %p226 = pneg %p126
      %p227 = pneg %p123
      %p228 = pneg %p152
      %p229 = pneg %p149
      %p230 = scmp.lt.s32.totalorder %s19, 1
      %s231 = scalar_select %p230, %s19, 1
      %s232 = smul.addr %s231, 8
      %s233 = scalar_lea.vmem %s4, %s232
      %p234 = scmp.lt.s32.totalorder %s19, 1
      %s235 = scalar_select %p234, %s19, 1
      %s236 = smul.addr %s235, 8
      %s237 = scalar_lea.vmem %s0, %s236
      %p238 = scmp.lt.s32.totalorder %s20, 0
      %s239 = scalar_select %p238, %s20, 0
      %s240 = smul.addr %s239, 2
      %s241 = scalar_lea.vmem %s1, %s240
      %p242 = scmp.lt.s32.totalorder %s19, 1
      %s243 = scalar_select %p242, %s19, 1
      %s244 = smul.addr %s243, 8
      %s245 = scalar_lea.vmem %s2, %s244
      %p246 = scmp.lt.s32.totalorder %s20, 0
      %s247 = scalar_select %p246, %s20, 0
      %s248 = scalar_lea.vmem %s3, %s247
      %p249 = scmp.lt.s32.totalorder %s19, 1
      %s250 = scalar_select %p249, %s19, 1
      %s251 = smul.addr %s250, 8
      %s252 = scalar_lea.vmem %s4, %s251
      %p253 = scmp.eq.s32.totalorder %s20, 0
      // Predicated region
      $region37: #{tpu_custom_call.1} parent=35 // pred_check
        %p254 = pneg %p253
      $region38: #{tpu_custom_call.1} parent=35 // pred_check_branch
        %256 = sbr.rel (%p254) target = $region40
      $region39: #{tpu_custom_call.1} parent=35 // pred_region
        %vm257 = vcmask 48128
        %258 = vst.msk [vmem:[%s252] sm:$0xff] %vm257, 2139095039
      $region40: #{tpu_custom_call.1} parent=35 // pred_fallthru
        _
      %v259 = vld [vmem:[%s237] sm:$0xff]
      %v260 = vld [vmem:[%s241] sm:$0x3]
      %v261 = vld [vmem:[%s245] sm:$0xff]
      %v262 = vld [vmem:[%s248] sm:$0x1]
      %264 = vset.pattern.permute.xlu0 0
      %265 = vperm.xlu0 %264, %v259
      %v266 = vpop.permute.xlu0 %265
      %v268 = vlaneseq
      %v269 = vshrl.u32 %v268, 7
      %v270 = vsub.s32 0, %v269
      %v271 = vrot.slane %v260, %v270
      %v272 = vsub.f32 %v266, %v271
      %v273 = vmul.f32 %v272, %v272
      %274 = vset.pattern.permute.xlu0 1
      %275 = vperm.xlu0 %274, %v259
      %v276 = vpop.permute.xlu0 %275
      %v278 = vlaneseq
      %v279 = vshrl.u32 %v278, 7
      %v280 = vsub.s32 1, %v279
      %v281 = vrot.slane %v260, %v280
      %v282 = vsub.f32 %v276, %v281
      %v283 = vmul.f32 %v282, %v282
      %v284 = vadd.f32 %v273, %v283
      %285 = vset.pattern.permute.xlu0 0
      %286 = vperm.xlu0 %285, %v261
      %v287 = vpop.permute.xlu0 %286
      %v288 = vlaneseq
      %v289 = vshrl.u32 %v288, 7
      %v290 = vsub.s32 0, %v289
      %v291 = vrot.slane %v262, %v290
      %vm292 = vcmp.eq.s32.totalorder %v287, %v291
      %v293 = vsel %vm292, %v284, 3e+38
      %s294 = smul.u32 %s20, 128
      %v295 = vlaneseq
      %v296 = vand.u32 %v295, 127
      %v297 = vstv %s294
      %v298 = vadd.s32 %v297, %v296
      %v300 = vand.u32 %v293, 4294967168
      %v301 = vor.u32 %v300, %v298
      %v302 = vld [vmem:[%s252] sm:$0xff]
      %v303 = vand.u32 %v301, 65535
      %v304 = vshra.s32 %v301, 16
      %v305 = vcvt.s32.f32 %v303
      %v306 = vcvt.s32.f32 %v304
      %307 = vmin.xlane.f32.xlu0 %v306
      %v308 = vpop.xlane.xlu0 %307
      %vm309 = vcmp.eq.f32.partialorder %v306, %v308
      %v310 = vsel %vm309, %v305, inf
      %311 = vmin.xlane.f32.xlu0 %v310
      %v312 = vpop.xlane.xlu0 %311
      %v313 = vcvt.f32.s32 %v312
      %v314 = vcvt.f32.s32 %v308
      %v315 = vshll.u32 %v314, 16
      %v316 = vadd.s32 %v315, %v313
      %vm317 = vcmask 48128
      %v318 = vsel %vm317, %v302, 2147483647
      %v319 = vand.u32 %v318, 65535
      %v320 = vshra.s32 %v318, 16
      %v321 = vcvt.s32.f32 %v319
      %v322 = vcvt.s32.f32 %v320
      %323 = vmin.xlane.f32.xlu0 %v322
      %v324 = vpop.xlane.xlu0 %323
      %vm325 = vcmp.eq.f32.partialorder %v322, %v324
      %v326 = vsel %vm325, %v321, inf
      %327 = vmin.xlane.f32.xlu0 %v326
      %v328 = vpop.xlane.xlu0 %327
      %v329 = vcvt.f32.s32 %v328
      %v330 = vcvt.f32.s32 %v324
      %v331 = vshll.u32 %v330, 16
      %v332 = vadd.s32 %v331, %v329
      %vm333 = vcmp.lt.s32.totalorder %v316, %v332
      %v334 = vsel %vm333, %v316, %v332
      %vm335 = vcmask 7168
      %336 = vst.msk [vmem:[%s252] sm:$0xff] %vm335, %v334
      %vm337 = vcmp.gt.s32.totalorder %v301, %v334
      %v338 = vsel %vm337, %v301, 2139095039
      %vm339 = vcmp.gt.s32.totalorder %v302, %v334
      %v340 = vsel %vm339, %v302, 2139095039
      %v341 = vand.u32 %v338, 65535
      %v342 = vshra.s32 %v338, 16
      %v343 = vcvt.s32.f32 %v341
      %v344 = vcvt.s32.f32 %v342
      %345 = vmin.xlane.f32.xlu0 %v344
      %v346 = vpop.xlane.xlu0 %345
      %vm347 = vcmp.eq.f32.partialorder %v344, %v346
      %v348 = vsel %vm347, %v343, inf
      %349 = vmin.xlane.f32.xlu0 %v348
      %v350 = vpop.xlane.xlu0 %349
      %v351 = vcvt.f32.s32 %v350
      %v352 = vcvt.f32.s32 %v346
      %v353 = vshll.u32 %v352, 16
      %v354 = vadd.s32 %v353, %v351
      %v355 = vsel %vm317, %v340, 2147483647
      %v356 = vand.u32 %v355, 65535
      %v357 = vshra.s32 %v355, 16
      %v358 = vcvt.s32.f32 %v356
      %v359 = vcvt.s32.f32 %v357
      %360 = vmin.xlane.f32.xlu0 %v359
      %v361 = vpop.xlane.xlu0 %360
      %vm362 = vcmp.eq.f32.partialorder %v359, %v361
      %v363 = vsel %vm362, %v358, inf
      %364 = vmin.xlane.f32.xlu0 %v363
      %v365 = vpop.xlane.xlu0 %364
      %v366 = vcvt.f32.s32 %v365
      %v367 = vcvt.f32.s32 %v361
      %v368 = vshll.u32 %v367, 16
      %v369 = vadd.s32 %v368, %v366
      %vm370 = vcmp.lt.s32.totalorder %v354, %v369
      %v371 = vsel %vm370, %v354, %v369
      %vm372 = vcmask 15368
      %373 = vst.msk [vmem:[%s252] sm:$0xff] %vm372, %v371
      %vm374 = vcmp.gt.s32.totalorder %v301, %v371
      %v375 = vsel %vm374, %v301, 2139095039
      %vm376 = vcmp.gt.s32.totalorder %v302, %v371
      %v377 = vsel %vm376, %v302, 2139095039
      %v378 = vand.u32 %v375, 65535
      %v379 = vshra.s32 %v375, 16
      %v380 = vcvt.s32.f32 %v378
      %v381 = vcvt.s32.f32 %v379
      %382 = vmin.xlane.f32.xlu0 %v381
      %v383 = vpop.xlane.xlu0 %382
      %vm384 = vcmp.eq.f32.partialorder %v381, %v383
      %v385 = vsel %vm384, %v380, inf
      %386 = vmin.xlane.f32.xlu0 %v385
      %v387 = vpop.xlane.xlu0 %386
      %v388 = vcvt.f32.s32 %v387
      %v389 = vcvt.f32.s32 %v383
      %v390 = vshll.u32 %v389, 16
      %v391 = vadd.s32 %v390, %v388
      %v392 = vsel %vm317, %v377, 2147483647
      %v393 = vand.u32 %v392, 65535
      %v394 = vshra.s32 %v392, 16
      %v395 = vcvt.s32.f32 %v393
      %v396 = vcvt.s32.f32 %v394
      %397 = vmin.xlane.f32.xlu0 %v396
      %v398 = vpop.xlane.xlu0 %397
      %vm399 = vcmp.eq.f32.partialorder %v396, %v398
      %v400 = vsel %vm399, %v395, inf
      %401 = vmin.xlane.f32.xlu0 %v400
      %v402 = vpop.xlane.xlu0 %401
      %v403 = vcvt.f32.s32 %v402
      %v404 = vcvt.f32.s32 %v398
      %v405 = vshll.u32 %v404, 16
      %v406 = vadd.s32 %v405, %v403
      %vm407 = vcmp.lt.s32.totalorder %v391, %v406
      %v408 = vsel %vm407, %v391, %v406
      %vm409 = vcmask 23568
      %410 = vst.msk [vmem:[%s252] sm:$0xff] %vm409, %v408
      %vm411 = vcmp.gt.s32.totalorder %v301, %v408
      %v412 = vsel %vm411, %v301, 2139095039
      %vm413 = vcmp.gt.s32.totalorder %v302, %v408
      %v414 = vsel %vm413, %v302, 2139095039
      %v415 = vand.u32 %v412, 65535
      %v416 = vshra.s32 %v412, 16
      %v417 = vcvt.s32.f32 %v415
      %v418 = vcvt.s32.f32 %v416
      %419 = vmin.xlane.f32.xlu0 %v418
      %v420 = vpop.xlane.xlu0 %419
      %vm421 = vcmp.eq.f32.partialorder %v418, %v420
      %v422 = vsel %vm421, %v417, inf
      %423 = vmin.xlane.f32.xlu0 %v422
      %v424 = vpop.xlane.xlu0 %423
      %v425 = vcvt.f32.s32 %v424
      %v426 = vcvt.f32.s32 %v420
      %v427 = vshll.u32 %v426, 16
      %v428 = vadd.s32 %v427, %v425
      %v429 = vsel %vm317, %v414, 2147483647
      %v430 = vand.u32 %v429, 65535
      %v431 = vshra.s32 %v429, 16
      %v432 = vcvt.s32.f32 %v430
      %v433 = vcvt.s32.f32 %v431
      %434 = vmin.xlane.f32.xlu0 %v433
      %v435 = vpop.xlane.xlu0 %434
      %vm436 = vcmp.eq.f32.partialorder %v433, %v435
      %v437 = vsel %vm436, %v432, inf
      %438 = vmin.xlane.f32.xlu0 %v437
      %v439 = vpop.xlane.xlu0 %438
      %v440 = vcvt.f32.s32 %v439
      %v441 = vcvt.f32.s32 %v435
      %v442 = vshll.u32 %v441, 16
      %v443 = vadd.s32 %v442, %v440
      %vm444 = vcmp.lt.s32.totalorder %v428, %v443
      %v445 = vsel %vm444, %v428, %v443
      %vm446 = vcmask 31768
      %447 = vst.msk [vmem:[%s252] sm:$0xff] %vm446, %v445
      %vm448 = vcmp.gt.s32.totalorder %v301, %v445
      %v449 = vsel %vm448, %v301, 2139095039
      %vm450 = vcmp.gt.s32.totalorder %v302, %v445
      %v451 = vsel %vm450, %v302, 2139095039
      %v452 = vand.u32 %v449, 65535
      %v453 = vshra.s32 %v449, 16
      %v454 = vcvt.s32.f32 %v452
      %v455 = vcvt.s32.f32 %v453
      %456 = vmin.xlane.f32.xlu0 %v455
      %v457 = vpop.xlane.xlu0 %456
      %vm458 = vcmp.eq.f32.partialorder %v455, %v457
      %v459 = vsel %vm458, %v454, inf
      %460 = vmin.xlane.f32.xlu0 %v459
      %v461 = vpop.xlane.xlu0 %460
      %v462 = vcvt.f32.s32 %v461
      %v463 = vcvt.f32.s32 %v457
      %v464 = vshll.u32 %v463, 16
      %v465 = vadd.s32 %v464, %v462
      %v466 = vsel %vm317, %v451, 2147483647
      %v467 = vand.u32 %v466, 65535
      %v468 = vshra.s32 %v466, 16
      %v469 = vcvt.s32.f32 %v467
      %v470 = vcvt.s32.f32 %v468
      %471 = vmin.xlane.f32.xlu0 %v470
      %v472 = vpop.xlane.xlu0 %471
      %vm473 = vcmp.eq.f32.partialorder %v470, %v472
      %v474 = vsel %vm473, %v469, inf
      %475 = vmin.xlane.f32.xlu0 %v474
      %v476 = vpop.xlane.xlu0 %475
      %v477 = vcvt.f32.s32 %v476
      %v478 = vcvt.f32.s32 %v472
      %v479 = vshll.u32 %v478, 16
      %v480 = vadd.s32 %v479, %v477
      %vm481 = vcmp.lt.s32.totalorder %v465, %v480
      %v482 = vsel %vm481, %v465, %v480
      %vm483 = vcmask 39968
      %484 = vst.msk [vmem:[%s252] sm:$0xff] %vm483, %v482
      %vm485 = vcmp.gt.s32.totalorder %v301, %v482
      %v486 = vsel %vm485, %v301, 2139095039
      %vm487 = vcmp.gt.s32.totalorder %v302, %v482
      %v488 = vsel %vm487, %v302, 2139095039
      %v489 = vand.u32 %v486, 65535
      %v490 = vshra.s32 %v486, 16
      %v491 = vcvt.s32.f32 %v489
      %v492 = vcvt.s32.f32 %v490
      %493 = vmin.xlane.f32.xlu0 %v492
      %v494 = vpop.xlane.xlu0 %493
      %vm495 = vcmp.eq.f32.partialorder %v492, %v494
      %v496 = vsel %vm495, %v491, inf
      %497 = vmin.xlane.f32.xlu0 %v496
      %v498 = vpop.xlane.xlu0 %497
      %v499 = vcvt.f32.s32 %v498
      %v500 = vcvt.f32.s32 %v494
      %v501 = vshll.u32 %v500, 16
      %v502 = vadd.s32 %v501, %v499
      %v503 = vsel %vm317, %v488, 2147483647
      %v504 = vand.u32 %v503, 65535
      %v505 = vshra.s32 %v503, 16
      %v506 = vcvt.s32.f32 %v504
      %v507 = vcvt.s32.f32 %v505
      %508 = vmin.xlane.f32.xlu0 %v507
      %v509 = vpop.xlane.xlu0 %508
      %vm510 = vcmp.eq.f32.partialorder %v507, %v509
      %v511 = vsel %vm510, %v506, inf
      %512 = vmin.xlane.f32.xlu0 %v511
      %v513 = vpop.xlane.xlu0 %512
      %v514 = vcvt.f32.s32 %v513
      %v515 = vcvt.f32.s32 %v509
      %v516 = vshll.u32 %v515, 16
      %v517 = vadd.s32 %v516, %v514
      %vm518 = vcmp.lt.s32.totalorder %v502, %v517
      %v519 = vsel %vm518, %v502, %v517
      %vm520 = vcmask 48168
      %521 = vst.msk [vmem:[%s252] sm:$0xff] %vm520, %v519
      %p522 = scmp.lt.s32.totalorder %s19, 1
      %s523 = scalar_select %p522, %s19, 1
      %s524 = smul.addr %s523, 8
      %s525 = scalar_lea.vmem %s4, %s524
      // Predicated region
      $region41: #{tpu_custom_call.1} parent=35 // pred_check
        %p526 = pneg %p149
      $region42: #{tpu_custom_call.1} parent=35 // pred_check_branch
        %528 = sbr.rel (%p526) target = $region44
      $region43: #{tpu_custom_call.1} parent=35 // pred_region
        _
      $region44: #{tpu_custom_call.1} parent=35 // pred_fallthru
        _
    $region36: #{tpu_custom_call.1} parent=5 // pred_fallthru
      _
    %p529 = scmp.le.s32.totalorder 2, %s10
    // Predicated region
    $region45: #{tpu_custom_call.1} parent=5 // pred_check
      %p530 = pneg %p529
    $region46: #{tpu_custom_call.1} parent=5 // pred_check_branch
      %532 = sbr.rel (%p530) target = $region48
    $region47: #{tpu_custom_call.1} parent=5 // pred_region
      %s533 = ssub.s32 %s10, 2
      // Predicated region
      $region49: #{tpu_custom_call.1} parent=47 // pred_check
        %p534 = pneg %p155
      $region50: #{tpu_custom_call.1} parent=47 // pred_check_branch
        %536 = sbr.rel (%p534) target = $region52
      $region51: #{tpu_custom_call.1} parent=47 // pred_region
        %p537 = scmp.lt.s32.totalorder %s21, 1
        %s538 = scalar_select %p537, %s21, 1
        %s539 = smul.addr %s538, 8
        %s540 = scalar_lea.vmem %s4, %s539
      $region52: #{tpu_custom_call.1} parent=47 // pred_fallthru
        _
    $region48: #{tpu_custom_call.1} parent=5 // pred_fallthru
      _
  $region6: #{tpu_custom_call.1} parent=0 // loop_footer
    %s14 = sadd.s32 1, %s10
  $region7: #{tpu_custom_call.1} parent=0 // loop_footer_branch
    %9 = sbr.rel target = $region3
  $region8: #{tpu_custom_call.1} parent=0 // loop_exit
    _

</llo_original>
